<compile_context>
chip_gen: v6e
topology: v6e:2x2x1
jax: 0.10.0
libtpu: 0.0.40
codegen_flags: <defaults>
</compile_context>

<pallas_src>
import functools

import jax
import jax.numpy as jnp
from jax.experimental import pallas as pl
from jax.experimental.pallas import tpu as pltpu


# ---------------------------------------------------------------------------
# Kernels
# ---------------------------------------------------------------------------

def _fsp_kernel(guide_ref, main_ref, w1g_ref, w1m_ref, b1_ref, w2_ref, b2_ref,
                out_ref):
    """Single-pass kernel: whole (bb, C, HW) slab per grid step."""
    g = guide_ref[...]                         # (bb, C, HW)
    m = main_ref[...]                          # (bb, C, HW)

    # Global average pool: sum over lanes; the 1/HW factor is folded into W1.
    sg = jnp.sum(g, axis=-1)                   # (bb, C)
    sm = jnp.sum(m, axis=-1)                   # (bb, C)

    # Tiny MLP, batched over the bb images of this block.
    # W1 @ cat([pool_g, pool_m]) == pool_g @ W1g.T + pool_m @ W1m.T
    h = (jnp.dot(sg, w1g_ref[...], preferred_element_type=jnp.float32)
         + jnp.dot(sm, w1m_ref[...], preferred_element_type=jnp.float32)
         + b1_ref[...])                        # (bb, hidden)
    h = jnp.maximum(h, 0.0)                    # ReLU
    z = jnp.dot(h, w2_ref[...], preferred_element_type=jnp.float32) + b2_ref[...]
    cw = jax.nn.sigmoid(z)                     # (bb, C) channel weights

    # Epilogue: broadcast-mul-add. (Temp live range is accounted for in the
    # VMEM budget; block sizes are kept modest so this stays comfortably in.)
    out_ref[...] = (m + cw[:, :, None] * g).astype(out_ref.dtype)


def _fsp_cw_kernel(guide_ref, main_ref, w1g_ref, w1m_ref, b1_ref, w2_ref,
                   b2_ref, cw_ref, sg_ref, sm_ref, *, hw_total, tile_hw):
    """Fallback pass 1: accumulate pooled sums over HW tiles, emit cw (bb,C,1)."""
    h = pl.program_id(1)

    @pl.when(h == 0)
    def _():
        sg_ref[...] = jnp.zeros_like(sg_ref)
        sm_ref[...] = jnp.zeros_like(sm_ref)

    g = guide_ref[...]                         # (bb, C, tile_hw)
    m = main_ref[...]
    if hw_total % tile_hw:
        # Last HW tile is partial: mask out-of-range lanes so the sum is exact.
        lane = jax.lax.broadcasted_iota(jnp.int32, g.shape, 2)
        valid = (h * tile_hw + lane) < hw_total
        g = jnp.where(valid, g, 0.0)
        m = jnp.where(valid, m, 0.0)
    sg_ref[...] += jnp.sum(g, axis=-1)
    sm_ref[...] += jnp.sum(m, axis=-1)

    @pl.when(h == pl.num_programs(1) - 1)
    def _():
        hh = (jnp.dot(sg_ref[...], w1g_ref[...], preferred_element_type=jnp.float32)
              + jnp.dot(sm_ref[...], w1m_ref[...], preferred_element_type=jnp.float32)
              + b1_ref[...])
        hh = jnp.maximum(hh, 0.0)
        z = jnp.dot(hh, w2_ref[...], preferred_element_type=jnp.float32) + b2_ref[...]
        cw_ref[...] = jax.nn.sigmoid(z)[:, :, None]        # (bb, C, 1)


def _fsp_apply_kernel(cw_ref, guide_ref, main_ref, out_ref):
    """Fallback pass 2: out = main + cw * guide, streaming HW tiles."""
    out_ref[...] = (main_ref[...]
                    + cw_ref[...] * guide_ref[...]).astype(out_ref.dtype)


# ---------------------------------------------------------------------------
# Generation-aware tuning
# ---------------------------------------------------------------------------

@functools.lru_cache(maxsize=1)
def _tpu_tuning():
    """Returns (target_block_bytes, vmem_limit_cap, min_total_grid_steps)."""
    kind = ""
    try:
        kind = jax.devices()[0].device_kind.lower()
    except Exception:  # pragma: no cover - conservative defaults
        pass
    if "v7" in kind or "7x" in kind:
        # 64 MiB physical VMEM, 2 TensorCores: smaller slabs, >=4 steps/core,
        # keep >=16 MiB headroom for Mosaic internal scratch.
        return (3 << 20, 48 << 20, 8)
    if "v6" in kind or "6e" in kind:
        # 128 MiB physical VMEM, 1 TC: bigger slabs shave per-step overhead.
        return (8 << 20, 96 << 20, 4)
    # v5e / unknown: 2-4 MiB slabs; must exceed the 16 MiB default scoped VMEM.
    return (4 << 20, 64 << 20, 4)


def _pick_block_b(batch, per_image_bytes, target_block_bytes, min_total_steps):
    """Batch-block size: ~target_block_bytes slabs, divides B, enough steps."""
    bb = max(1, min(batch, target_block_bytes // max(per_image_bytes, 1)))
    if batch // bb < min_total_steps:
        # Prefer >= min_total_steps grid steps (pipelining / megacore sharding)
        # but never shrink slabs below ~1 MiB.
        bb_for_steps = max(1, batch // min_total_steps)
        bb_floor = max(1, -(-(1 << 20) // per_image_bytes))
        bb = min(bb, max(bb_for_steps, bb_floor))
    # Avoid partial (masked) edge blocks on the batch axis.
    while batch % bb:
        bb -= 1
    return bb


# ---------------------------------------------------------------------------
# pallas_call builders
# ---------------------------------------------------------------------------

def _fsp_single_pass(g3, m3, w1g_t, w1m_t, b1r, w2_t, b2r,
                     target_bytes, vmem_cap, min_steps):
    B, C, HW = g3.shape
    hidden = w1g_t.shape[1]
    per_image_bytes = C * HW * 4
    bb = _pick_block_b(B, per_image_bytes, target_bytes, min_steps)
    num_blocks = B // bb
    block_bytes = bb * per_image_bytes

    weight_bytes = 4 * (w1g_t.size + w1m_t.size + w2_t.size + b1r.size + b2r.size)
    # 3 streams x double-buffering (~6x) + epilogue temps (~2x) + weights.
    vmem_limit = int(min(vmem_cap,
                         max(32 << 20, 8 * block_bytes + weight_bytes + (2 << 20))))
    cost = pl.CostEstimate(
        flops=2 * B * C * HW + 2 * B * (2 * C * hidden + hidden * C),
        transcendentals=B * C,
        bytes_accessed=3 * B * C * HW * 4 + weight_bytes)

    return pl.pallas_call(
        _fsp_kernel,
        out_shape=jax.ShapeDtypeStruct((B, C, HW), jnp.float32),
        grid_spec=pltpu.PrefetchScalarGridSpec(
            num_scalar_prefetch=0,
            grid=(num_blocks,),
            in_specs=[
                pl.BlockSpec((bb, C, HW), lambda b: (b, 0, 0)),      # guide
                pl.BlockSpec((bb, C, HW), lambda b: (b, 0, 0)),      # main
                pl.BlockSpec((C, hidden), lambda b: (0, 0)),         # W1 guide^T
                pl.BlockSpec((C, hidden), lambda b: (0, 0)),         # W1 main^T
                pl.BlockSpec((1, hidden), lambda b: (0, 0)),         # b1
                pl.BlockSpec((hidden, C), lambda b: (0, 0)),         # W2^T
                pl.BlockSpec((1, C), lambda b: (0, 0)),              # b2
            ],
            out_specs=pl.BlockSpec((bb, C, HW), lambda b: (b, 0, 0)),
        ),
        compiler_params=pltpu.CompilerParams(
            dimension_semantics=("parallel",),
            vmem_limit_bytes=vmem_limit),
        # NOTE: no input_output_aliases — aliasing a non-donated jit argument
        # forces a hidden defensive copy of `main` (an extra full HBM pass).
        cost_estimate=cost,
    )(g3, m3, w1g_t, w1m_t, b1r, w2_t, b2r)


def _fsp_two_pass(g3, m3, w1g_t, w1m_t, b1r, w2_t, b2r,
                  target_bytes, vmem_cap, min_steps):
    """HW-tiled fallback for feature maps too large to fit whole in VMEM."""
    B, C, HW = g3.shape
    hidden = w1g_t.shape[1]

    # Lane-axis tile: multiple of 128, sized so one (1, C, thw) slab is about
    # target_bytes; never larger than the HW extent rounded up to 128.
    thw = max(128, (target_bytes // (C * 4)) // 128 * 128)
    thw = min(thw, max(128, ((HW + 127) // 128) * 128))
    nhw = (HW + thw - 1) // thw
    bb = 1                     # per-image slabs are already large in this regime
    nb = B

    tile_bytes = bb * C * thw * 4
    weight_bytes = 4 * (w1g_t.size + w1m_t.size + w2_t.size + b1r.size + b2r.size)
    vmem_limit = int(min(vmem_cap,
                         max(32 << 20, 8 * tile_bytes + weight_bytes + (2 << 20))))

    # --- Pass 1: pooled sums -> channel weights (B, C, 1).
    kern_a = functools.partial(_fsp_cw_kernel, hw_total=HW, tile_hw=thw)
    cw = pl.pallas_call(
        kern_a,
        out_shape=jax.ShapeDtypeStruct((B, C, 1), jnp.float32),
        grid_spec=pltpu.PrefetchScalarGridSpec(
            num_scalar_prefetch=0,
            grid=(nb, nhw),
            in_specs=[
                pl.BlockSpec((bb, C, thw), lambda b, h: (b, 0, h)),   # guide
                pl.BlockSpec((bb, C, thw), lambda b, h: (b, 0, h)),   # main
                pl.BlockSpec((C, hidden), lambda b, h: (0, 0)),
                pl.BlockSpec((C, hidden), lambda b, h: (0, 0)),
                pl.BlockSpec((1, hidden), lambda b, h: (0, 0)),
                pl.BlockSpec((hidden, C), lambda b, h: (0, 0)),
                pl.BlockSpec((1, C), lambda b, h: (0, 0)),
            ],
            out_specs=pl.BlockSpec((bb, C, 1), lambda b, h: (b, 0, 0)),
            scratch_shapes=[pltpu.VMEM((bb, C), jnp.float32),
                            pltpu.VMEM((bb, C), jnp.float32)],
        ),
        compiler_params=pltpu.CompilerParams(
            dimension_semantics=("parallel", "arbitrary"),
            vmem_limit_bytes=vmem_limit),
        cost_estimate=pl.CostEstimate(
            flops=2 * B * C * HW + 2 * B * (2 * C * hidden + hidden * C),
            transcendentals=B * C,
            bytes_accessed=2 * B * C * HW * 4 + weight_bytes),
    )(g3, m3, w1g_t, w1m_t, b1r, w2_t, b2r)

    # --- Pass 2: out = main + cw * guide, streaming the same HW tiles.
    out = pl.pallas_call(
        _fsp_apply_kernel,
        out_shape=jax.ShapeDtypeStruct((B, C, HW), jnp.float32),
        grid_spec=pltpu.PrefetchScalarGridSpec(
            num_scalar_prefetch=0,
            grid=(nb, nhw),
            in_specs=[
                pl.BlockSpec((bb, C, 1), lambda b, h: (b, 0, 0)),     # cw
                pl.BlockSpec((bb, C, thw), lambda b, h: (b, 0, h)),   # guide
                pl.BlockSpec((bb, C, thw), lambda b, h: (b, 0, h)),   # main
            ],
            out_specs=pl.BlockSpec((bb, C, thw), lambda b, h: (b, 0, h)),
        ),
        compiler_params=pltpu.CompilerParams(
            dimension_semantics=("parallel", "parallel"),
            vmem_limit_bytes=vmem_limit),
        cost_estimate=pl.CostEstimate(
            flops=2 * B * C * HW,
            transcendentals=0,
            bytes_accessed=3 * B * C * HW * 4 + B * C * 4),
    )(cw, g3, m3)
    return out


# ---------------------------------------------------------------------------
# Public wrapper
# ---------------------------------------------------------------------------

@functools.partial(jax.jit, static_argnames=("block_bytes", "force_hw_tiling"))
def fsp_forward(guide, main, w1, b1, w2, b2, *,
                block_bytes=None, force_hw_tiling=False):
    """guide, main: (B, C, H, W) f32; w1:(hidden,2C), b1:(hidden,), w2:(C,hidden), b2:(C,)."""
    B, C, H, W = guide.shape
    HW = H * W
    hidden = w1.shape[0]

    target_bytes, vmem_cap, min_steps = _tpu_tuning()
    if block_bytes is not None:
        target_bytes = int(block_bytes)

    # Host-side weight prep: split W1 into guide/main halves, fold 1/HW in.
    inv_hw = jnp.float32(1.0 / HW)
    w1g_t = (w1[:, :C] * inv_hw).T.astype(jnp.float32)     # (C, hidden)
    w1m_t = (w1[:, C:] * inv_hw).T.astype(jnp.float32)     # (C, hidden)
    w2_t = w2.T.astype(jnp.float32)                        # (hidden, C)
    b1r = b1.reshape(1, hidden).astype(jnp.float32)
    b2r = b2.reshape(1, C).astype(jnp.float32)

    g3 = guide.reshape(B, C, HW).astype(jnp.float32)
    m3 = main.reshape(B, C, HW).astype(jnp.float32)

    per_image_bytes = C * HW * 4
    # Fast path needs ~8x one image's slab in VMEM (streams x buffers + temps).
    use_hw_tiling = force_hw_tiling or (8 * per_image_bytes > vmem_cap)

    if use_hw_tiling:
        out3 = _fsp_two_pass(g3, m3, w1g_t, w1m_t, b1r, w2_t, b2r,
                             target_bytes, vmem_cap, min_steps)
    else:
        out3 = _fsp_single_pass(g3, m3, w1g_t, w1m_t, b1r, w2_t, b2r,
                                target_bytes, vmem_cap, min_steps)
    return out3.reshape(B, C, H, W)


def fsp_reference(guide, main, w1, b1, w2, b2):
    combined = jnp.concatenate([guide, main], axis=1)          # (B, 2C, H, W)
    y = jnp.mean(combined, axis=(2, 3))                        # (B, 2C)
    h = jnp.maximum(y @ w1.T + b1, 0.0)                        # (B, hidden)
    cw = jax.nn.sigmoid(h @ w2.T + b2)                         # (B, C)
    return main + cw[:, :, None, None] * guide


# ---------------------------------------------------------------------------
# Self-test
# ---------------------------------------------------------------------------

def _make_inputs(key, B, C, H, W, reduction):
    in2 = 2 * C
    hidden = max(1, C // reduction)   # FilterLayer: out_planes // reduction
    k_g, k_m, k_w1, k_b1, k_w2, k_b2 = jax.random.split(key, 6)
    guide = jax.random.normal(k_g, (B, C, H, W), dtype=jnp.float32)
    main = jax.random.normal(k_m, (B, C, H, W), dtype=jnp.float32)
    w1 = 0.1 * jax.random.normal(k_w1, (hidden, in2), dtype=jnp.float32)
    b1 = 0.1 * jax.random.normal(k_b1, (hidden,), dtype=jnp.float32)
    w2 = 0.1 * jax.random.normal(k_w2, (C, hidden), dtype=jnp.float32)
    b2 = 0.1 * jax.random.normal(k_b2, (C,), dtype=jnp.float32)
    return guide, main, w1, b1, w2, b2


if __name__ == "__main__":
    key = jax.random.PRNGKey(0)
    B, C, reduction = 4, 32, 16

    # 1) Fast path, lane-aligned spatial (HW = 256).
    inputs = _make_inputs(key, B, C, 16, 16, reduction)
    out = jax.block_until_ready(fsp_forward(*inputs))
    ref = fsp_reference(*inputs)
    assert out.shape == (B, C, 16, 16)
    assert jnp.allclose(out, ref, atol=1e-5, rtol=1e-5), "fast path (16x16) mismatch"

    # 2) Fast path, non-128-multiple spatial (HW = 225) — no host pad/slice.
    inputs15 = _make_inputs(jax.random.PRNGKey(1), B, C, 15, 15, reduction)
    out15 = jax.block_until_ready(fsp_forward(*inputs15))
    ref15 = fsp_reference(*inputs15)
    assert jnp.allclose(out15, ref15, atol=1e-5, rtol=1e-5), "fast path (15x15) mismatch"

    # 3) Large-feature-map fallback (HW-tiled, two passes), forced at small
    #    shapes so the accumulation + masking path is exercised too.
    out15_t = jax.block_until_ready(
        fsp_forward(*inputs15, block_bytes=16 * 1024, force_hw_tiling=True))
    assert jnp.allclose(out15_t, ref15, atol=1e-5, rtol=1e-5), "tiled path mismatch"

    print("KERNEL_OK")
</pallas_src>

<mosaic_0001>
module attributes {stable_mosaic.version = 11 : i64} {
  func.func @_fsp_kernel(%arg0: i32, %arg1: memref<4x32x256xf32, #tpu.memory_space<vmem>>, %arg2: memref<4x32x256xf32, #tpu.memory_space<vmem>>, %arg3: memref<32x2xf32, #tpu.memory_space<vmem>>, %arg4: memref<32x2xf32, #tpu.memory_space<vmem>>, %arg5: memref<1x2xf32, #tpu.memory_space<vmem>>, %arg6: memref<2x32xf32, #tpu.memory_space<vmem>>, %arg7: memref<1x32xf32, #tpu.memory_space<vmem>>, %arg8: memref<4x32x256xf32, #tpu.memory_space<vmem>>) attributes {dimension_semantics = [#tpu.dimension_semantics<parallel>], iteration_bounds = array<i64: 1>, scalar_prefetch = 0 : i64, scratch_operands = 0 : i64, tpu.core_type = #tpu.core_type<tc>, window_params = [{transform_indices = @transform_0, window_bounds = array<i64: 4, 32, 256>}, {transform_indices = @transform_1, window_bounds = array<i64: 4, 32, 256>}, {pipeline_mode = #tpu.pipeline_mode<synchronous>, transform_indices = @transform_2, window_bounds = array<i64: 32, 2>}, {pipeline_mode = #tpu.pipeline_mode<synchronous>, transform_indices = @transform_3, window_bounds = array<i64: 32, 2>}, {pipeline_mode = #tpu.pipeline_mode<synchronous>, transform_indices = @transform_4, window_bounds = array<i64: 1, 2>}, {pipeline_mode = #tpu.pipeline_mode<synchronous>, transform_indices = @transform_5, window_bounds = array<i64: 2, 32>}, {pipeline_mode = #tpu.pipeline_mode<synchronous>, transform_indices = @transform_6, window_bounds = array<i64: 1, 32>}, {transform_indices = @transform_7, window_bounds = array<i64: 4, 32, 256>}]} {
    %c0 = arith.constant 0 : index
    %c0_0 = arith.constant 0 : index
    %c0_1 = arith.constant 0 : index
    %0 = vector.load %arg1[%c0, %c0_0, %c0_1] : memref<4x32x256xf32, #tpu.memory_space<vmem>>, vector<4x32x256xf32>
    %c0_2 = arith.constant 0 : index
    %c0_3 = arith.constant 0 : index
    %c0_4 = arith.constant 0 : index
    %1 = vector.load %arg2[%c0_2, %c0_3, %c0_4] : memref<4x32x256xf32, #tpu.memory_space<vmem>>, vector<4x32x256xf32>
    %cst = arith.constant dense<0.000000e+00> : vector<4x32xf32>
    %2 = vector.multi_reduction <add>, %0, %cst [2] : vector<4x32x256xf32> to vector<4x32xf32>
    %cst_5 = arith.constant dense<0.000000e+00> : vector<4x32xf32>
    %3 = vector.multi_reduction <add>, %1, %cst_5 [2] : vector<4x32x256xf32> to vector<4x32xf32>
    %c0_6 = arith.constant 0 : index
    %c0_7 = arith.constant 0 : index
    %4 = vector.load %arg3[%c0_6, %c0_7] : memref<32x2xf32, #tpu.memory_space<vmem>>, vector<32x2xf32>
    %cst_8 = arith.constant dense<0.000000e+00> : vector<4x2xf32>
    %5 = tpu.matmul %2, %4, %cst_8 {dimension_numbers = #tpu.dot_dimension_numbers<[1], [0], [0], [1], [0, 0, 1, 1], [], []>} : vector<4x32xf32>, vector<32x2xf32>, vector<4x2xf32> -> vector<4x2xf32>
    %c0_9 = arith.constant 0 : index
    %c0_10 = arith.constant 0 : index
    %6 = vector.load %arg4[%c0_9, %c0_10] : memref<32x2xf32, #tpu.memory_space<vmem>>, vector<32x2xf32>
    %cst_11 = arith.constant dense<0.000000e+00> : vector<4x2xf32>
    %7 = tpu.matmul %3, %6, %cst_11 {dimension_numbers = #tpu.dot_dimension_numbers<[1], [0], [0], [1], [0, 0, 1, 1], [], []>} : vector<4x32xf32>, vector<32x2xf32>, vector<4x2xf32> -> vector<4x2xf32>
    %8 = arith.addf %5, %7 : vector<4x2xf32>
    %c0_12 = arith.constant 0 : index
    %c0_13 = arith.constant 0 : index
    %9 = vector.load %arg5[%c0_12, %c0_13] : memref<1x2xf32, #tpu.memory_space<vmem>>, vector<1x2xf32>
    %10 = vector.broadcast %9 : vector<1x2xf32> to vector<4x2xf32>
    %11 = arith.addf %8, %10 : vector<4x2xf32>
    %cst_14 = arith.constant 0.000000e+00 : f32
    %12 = vector.broadcast %cst_14 : f32 to vector<4x2xf32>
    %13 = arith.maximumf %11, %12 : vector<4x2xf32>
    %c0_15 = arith.constant 0 : index
    %c0_16 = arith.constant 0 : index
    %14 = vector.load %arg6[%c0_15, %c0_16] : memref<2x32xf32, #tpu.memory_space<vmem>>, vector<2x32xf32>
    %cst_17 = arith.constant dense<0.000000e+00> : vector<4x32xf32>
    %15 = tpu.matmul %13, %14, %cst_17 {dimension_numbers = #tpu.dot_dimension_numbers<[1], [0], [0], [1], [0, 0, 1, 1], [], []>} : vector<4x2xf32>, vector<2x32xf32>, vector<4x32xf32> -> vector<4x32xf32>
    %c0_18 = arith.constant 0 : index
    %c0_19 = arith.constant 0 : index
    %16 = vector.load %arg7[%c0_18, %c0_19] : memref<1x32xf32, #tpu.memory_space<vmem>>, vector<1x32xf32>
    %17 = vector.broadcast %16 : vector<1x32xf32> to vector<4x32xf32>
    %18 = arith.addf %15, %17 : vector<4x32xf32>
    %19 = arith.negf %18 : vector<4x32xf32>
    %20 = math.exp %19 : vector<4x32xf32>
    %cst_20 = arith.constant 1.000000e+00 : f32
    %21 = vector.broadcast %cst_20 : f32 to vector<4x32xf32>
    %22 = arith.addf %21, %20 : vector<4x32xf32>
    %23 = arith.divf %21, %22 : vector<4x32xf32>
    %24 = vector.shape_cast %23 : vector<4x32xf32> to vector<4x32x1xf32>
    %25 = vector.broadcast %24 : vector<4x32x1xf32> to vector<4x32x256xf32>
    %26 = arith.mulf %25, %0 : vector<4x32x256xf32>
    %27 = arith.addf %1, %26 : vector<4x32x256xf32>
    %c0_21 = arith.constant 0 : index
    %c0_22 = arith.constant 0 : index
    %c0_23 = arith.constant 0 : index
    %28 = vector.load %arg8[%c0_21, %c0_22, %c0_23] : memref<4x32x256xf32, #tpu.memory_space<vmem>>, vector<4x32x256xf32>
    tpu.vector_store %arg8[%c0_21, %c0_22, %c0_23], %27 {strides = array<i32>} : memref<4x32x256xf32, #tpu.memory_space<vmem>>, vector<4x32x256xf32>,
    return
  }
  func.func @transform_0(%arg0: i32) -> (i32, i32, i32) {
    %c0_i32 = arith.constant 0 : i32
    %c0_i32_0 = arith.constant 0 : i32
    %c0_i32_1 = arith.constant 0 : i32
    return %arg0, %c0_i32, %c0_i32_0 : i32, i32, i32
  }
  func.func @transform_1(%arg0: i32) -> (i32, i32, i32) {
    %c0_i32 = arith.constant 0 : i32
    %c0_i32_0 = arith.constant 0 : i32
    %c0_i32_1 = arith.constant 0 : i32
    return %arg0, %c0_i32, %c0_i32_0 : i32, i32, i32
  }
  func.func @transform_2(%arg0: i32) -> (i32, i32) {
    %c0_i32 = arith.constant 0 : i32
    %c0_i32_0 = arith.constant 0 : i32
    %c0_i32_1 = arith.constant 0 : i32
    return %c0_i32, %c0_i32_0 : i32, i32
  }
  func.func @transform_3(%arg0: i32) -> (i32, i32) {
    %c0_i32 = arith.constant 0 : i32
    %c0_i32_0 = arith.constant 0 : i32
    %c0_i32_1 = arith.constant 0 : i32
    return %c0_i32, %c0_i32_0 : i32, i32
  }
  func.func @transform_4(%arg0: i32) -> (i32, i32) {
    %c0_i32 = arith.constant 0 : i32
    %c0_i32_0 = arith.constant 0 : i32
    %c0_i32_1 = arith.constant 0 : i32
    return %c0_i32, %c0_i32_0 : i32, i32
  }
  func.func @transform_5(%arg0: i32) -> (i32, i32) {
    %c0_i32 = arith.constant 0 : i32
    %c0_i32_0 = arith.constant 0 : i32
    %c0_i32_1 = arith.constant 0 : i32
    return %c0_i32, %c0_i32_0 : i32, i32
  }
  func.func @transform_6(%arg0: i32) -> (i32, i32) {
    %c0_i32 = arith.constant 0 : i32
    %c0_i32_0 = arith.constant 0 : i32
    %c0_i32_1 = arith.constant 0 : i32
    return %c0_i32, %c0_i32_0 : i32, i32
  }
  func.func @transform_7(%arg0: i32) -> (i32, i32, i32) {
    %c0_i32 = arith.constant 0 : i32
    %c0_i32_0 = arith.constant 0 : i32
    %c0_i32_1 = arith.constant 0 : i32
    return %arg0, %c0_i32, %c0_i32_0 : i32, i32, i32
  }
}

</mosaic_0001>

<llo_original>
// kernel: fsp_forward.1
$region0: #{fsp_forward.1}
  #allocation0 [shape = 'u32[]', space=smem, size = 0x4, offset = 0x4, fixed_abs, tag = 'smem constant byte address 0x4 - core index']
  #allocation1 [shape = 'u32[144,128]{1,0:T(1,128)}', space=vmem, size = 0x12000, scoped, tag = 'internal scratch']
  %s0 = inlined_call_operand.vmem [shape: f32[4,32,256], index: 0, kind: input, shape index: {}]
  %s1 = inlined_call_operand.vmem [shape: f32[4,32,256], index: 1, kind: input, shape index: {}]
  %s2 = inlined_call_operand.vmem [shape: f32[32,2], index: 2, kind: input, shape index: {}]
  %s3 = inlined_call_operand.vmem [shape: f32[32,2], index: 3, kind: input, shape index: {}]
  %s4 = inlined_call_operand.vmem [shape: f32[1,2], index: 4, kind: input, shape index: {}]
  %s5 = inlined_call_operand.vmem [shape: f32[2,32], index: 5, kind: input, shape index: {}]
  %s6 = inlined_call_operand.vmem [shape: f32[1,32], index: 6, kind: input, shape index: {}]
  %s7 = inlined_call_operand.vmem [shape: f32[4,32,256], index: 7, kind: output, shape index: {}]
  %s8 = sld [smem:[#allocation0]]
  $region38: #{fsp_forward.1} parent=0
    _
  %s10 = ssub.s32 1, %s8
  %s11 = scalar_select 0, %s10, %s8
  // Predicated region
  $region2: #{fsp_forward.1} parent=0 // pred_check
    _
  $region3: #{fsp_forward.1} parent=0 // pred_check_branch
    %13 = sbr.rel (0) target = $region5
  $region4: #{fsp_forward.1} parent=0 // pred_region
    _
  $region5: #{fsp_forward.1} parent=0 // pred_fallthru
    _
  // Predicated region
  $region6: #{fsp_forward.1} parent=0 // pred_check
    _
  $region7: #{fsp_forward.1} parent=0 // pred_check_branch
    %15 = sbr.rel (0) target = $region9
  $region8: #{fsp_forward.1} parent=0 // pred_region
    _
  $region9: #{fsp_forward.1} parent=0 // pred_fallthru
    _
  // Predicated region
  $region10: #{fsp_forward.1} parent=0 // pred_check
    _
  $region11: #{fsp_forward.1} parent=0 // pred_check_branch
    %17 = sbr.rel (0) target = $region13
  $region12: #{fsp_forward.1} parent=0 // pred_region
    _
  $region13: #{fsp_forward.1} parent=0 // pred_fallthru
    _
  // Predicated region
  $region14: #{fsp_forward.1} parent=0 // pred_check
    _
  $region15: #{fsp_forward.1} parent=0 // pred_check_branch
    %19 = sbr.rel (0) target = $region17
  $region16: #{fsp_forward.1} parent=0 // pred_region
    _
  $region17: #{fsp_forward.1} parent=0 // pred_fallthru
    _
  // Predicated region
  $region18: #{fsp_forward.1} parent=0 // pred_check
    _
  $region19: #{fsp_forward.1} parent=0 // pred_check_branch
    %21 = sbr.rel (0) target = $region21
  $region20: #{fsp_forward.1} parent=0 // pred_region
    _
  $region21: #{fsp_forward.1} parent=0 // pred_fallthru
    _
  // Predicated region
  $region22: #{fsp_forward.1} parent=0 // pred_check
    _
  $region23: #{fsp_forward.1} parent=0 // pred_check_branch
    %23 = sbr.rel (0) target = $region25
  $region24: #{fsp_forward.1} parent=0 // pred_region
    _
  $region25: #{fsp_forward.1} parent=0 // pred_fallthru
    _
  // Predicated region
  $region26: #{fsp_forward.1} parent=0 // pred_check
    _
  $region27: #{fsp_forward.1} parent=0 // pred_check_branch
    %25 = sbr.rel (0) target = $region29
  $region28: #{fsp_forward.1} parent=0 // pred_region
    _
  $region29: #{fsp_forward.1} parent=0 // pred_fallthru
    _
  %v26 = vld [vmem:[%s0] sm:$0xff]
  %v27 = vld [vmem:[%s0 + $0x8] sm:$0xff]
  %v28 = vld [vmem:[%s0 + $0x10] sm:$0xff]
  %v29 = vld [vmem:[%s0 + $0x18] sm:$0xff]
  %v30 = vld [vmem:[%s0 + $0x20] sm:$0xff]
  %v31 = vld [vmem:[%s0 + $0x28] sm:$0xff]
  %v32 = vld [vmem:[%s0 + $0x30] sm:$0xff]
  %v33 = vld [vmem:[%s0 + $0x38] sm:$0xff]
  %v34 = vld [vmem:[%s0 + $0x40] sm:$0xff]
  %v35 = vld [vmem:[%s0 + $0x48] sm:$0xff]
  %v36 = vld [vmem:[%s0 + $0x50] sm:$0xff]
  %v37 = vld [vmem:[%s0 + $0x58] sm:$0xff]
  %v38 = vld [vmem:[%s0 + $0x60] sm:$0xff]
  %v39 = vld [vmem:[%s0 + $0x68] sm:$0xff]
  %v40 = vld [vmem:[%s0 + $0x70] sm:$0xff]
  %v41 = vld [vmem:[%s0 + $0x78] sm:$0xff]
  %v42 = vld [vmem:[%s0 + $0x80] sm:$0xff]
  %v43 = vld [vmem:[%s0 + $0x88] sm:$0xff]
  %v44 = vld [vmem:[%s0 + $0x90] sm:$0xff]
  %v45 = vld [vmem:[%s0 + $0x98] sm:$0xff]
  %v46 = vld [vmem:[%s0 + $0xa0] sm:$0xff]
  %v47 = vld [vmem:[%s0 + $0xa8] sm:$0xff]
  %v48 = vld [vmem:[%s0 + $0xb0] sm:$0xff]
  %v49 = vld [vmem:[%s0 + $0xb8] sm:$0xff]
  %v50 = vld [vmem:[%s0 + $0xc0] sm:$0xff]
  %v51 = vld [vmem:[%s0 + $0xc8] sm:$0xff]
  %v52 = vld [vmem:[%s0 + $0xd0] sm:$0xff]
  %v53 = vld [vmem:[%s0 + $0xd8] sm:$0xff]
  %v54 = vld [vmem:[%s0 + $0xe0] sm:$0xff]
  %v55 = vld [vmem:[%s0 + $0xe8] sm:$0xff]
  %v56 = vld [vmem:[%s0 + $0xf0] sm:$0xff]
  %v57 = vld [vmem:[%s0 + $0xf8] sm:$0xff]
  %v58 = vld [vmem:[%s1] sm:$0xff]
  %v59 = vld [vmem:[%s1 + $0x8] sm:$0xff]
  %v60 = vld [vmem:[%s1 + $0x10] sm:$0xff]
  %v61 = vld [vmem:[%s1 + $0x18] sm:$0xff]
  %v62 = vld [vmem:[%s1 + $0x20] sm:$0xff]
  %v63 = vld [vmem:[%s1 + $0x28] sm:$0xff]
  %v64 = vld [vmem:[%s1 + $0x30] sm:$0xff]
  %v65 = vld [vmem:[%s1 + $0x38] sm:$0xff]
  %v66 = vld [vmem:[%s1 + $0x40] sm:$0xff]
  %v67 = vld [vmem:[%s1 + $0x48] sm:$0xff]
  %v68 = vld [vmem:[%s1 + $0x50] sm:$0xff]
  %v69 = vld [vmem:[%s1 + $0x58] sm:$0xff]
  %v70 = vld [vmem:[%s1 + $0x60] sm:$0xff]
  %v71 = vld [vmem:[%s1 + $0x68] sm:$0xff]
  %v72 = vld [vmem:[%s1 + $0x70] sm:$0xff]
  %v73 = vld [vmem:[%s1 + $0x78] sm:$0xff]
  %v74 = vld [vmem:[%s1 + $0x80] sm:$0xff]
  %v75 = vld [vmem:[%s1 + $0x88] sm:$0xff]
  %v76 = vld [vmem:[%s1 + $0x90] sm:$0xff]
  %v77 = vld [vmem:[%s1 + $0x98] sm:$0xff]
  %v78 = vld [vmem:[%s1 + $0xa0] sm:$0xff]
  %v79 = vld [vmem:[%s1 + $0xa8] sm:$0xff]
  %v80 = vld [vmem:[%s1 + $0xb0] sm:$0xff]
  %v81 = vld [vmem:[%s1 + $0xb8] sm:$0xff]
  %v82 = vld [vmem:[%s1 + $0xc0] sm:$0xff]
  %v83 = vld [vmem:[%s1 + $0xc8] sm:$0xff]
  %v84 = vld [vmem:[%s1 + $0xd0] sm:$0xff]
  %v85 = vld [vmem:[%s1 + $0xd8] sm:$0xff]
  %v86 = vld [vmem:[%s1 + $0xe0] sm:$0xff]
  %v87 = vld [vmem:[%s1 + $0xe8] sm:$0xff]
  %v88 = vld [vmem:[%s1 + $0xf0] sm:$0xff]
  %v89 = vld [vmem:[%s1 + $0xf8] sm:$0xff]
  %v90 = vadd.f32 %v26, %v27
  %91 = vadd.xlane.f32.xlu0 %v90
  %v92 = vpop.xlane.xlu0 %91
  %v93 = vadd.f32 %v28, %v29
  %94 = vadd.xlane.f32.xlu0 %v93
  %v95 = vpop.xlane.xlu0 %94
  %v96 = vadd.f32 %v30, %v31
  %97 = vadd.xlane.f32.xlu0 %v96
  %v98 = vpop.xlane.xlu0 %97
  %v99 = vadd.f32 %v32, %v33
  %100 = vadd.xlane.f32.xlu0 %v99
  %v101 = vpop.xlane.xlu0 %100
  %v102 = vadd.f32 %v34, %v35
  %103 = vadd.xlane.f32.xlu0 %v102
  %v104 = vpop.xlane.xlu0 %103
  %v105 = vadd.f32 %v36, %v37
  %106 = vadd.xlane.f32.xlu0 %v105
  %v107 = vpop.xlane.xlu0 %106
  %v108 = vadd.f32 %v38, %v39
  %109 = vadd.xlane.f32.xlu0 %v108
  %v110 = vpop.xlane.xlu0 %109
  %v111 = vadd.f32 %v40, %v41
  %112 = vadd.xlane.f32.xlu0 %v111
  %v113 = vpop.xlane.xlu0 %112
  %v114 = vadd.f32 %v42, %v43
  %115 = vadd.xlane.f32.xlu0 %v114
  %v116 = vpop.xlane.xlu0 %115
  %v117 = vadd.f32 %v44, %v45
  %118 = vadd.xlane.f32.xlu0 %v117
  %v119 = vpop.xlane.xlu0 %118
  %v120 = vadd.f32 %v46, %v47
  %121 = vadd.xlane.f32.xlu0 %v120
  %v122 = vpop.xlane.xlu0 %121
  %v123 = vadd.f32 %v48, %v49
  %124 = vadd.xlane.f32.xlu0 %v123
  %v125 = vpop.xlane.xlu0 %124
  %v126 = vadd.f32 %v50, %v51
  %127 = vadd.xlane.f32.xlu0 %v126
  %v128 = vpop.xlane.xlu0 %127
  %v129 = vadd.f32 %v52, %v53
  %130 = vadd.xlane.f32.xlu0 %v129
  %v131 = vpop.xlane.xlu0 %130
  %v132 = vadd.f32 %v54, %v55
  %133 = vadd.xlane.f32.xlu0 %v132
  %v134 = vpop.xlane.xlu0 %133
  %v135 = vadd.f32 %v56, %v57
  %136 = vadd.xlane.f32.xlu0 %v135
  %v137 = vpop.xlane.xlu0 %136
  %v138 = vadd.f32 %v58, %v59
  %139 = vadd.xlane.f32.xlu0 %v138
  %v140 = vpop.xlane.xlu0 %139
  %v141 = vadd.f32 %v60, %v61
  %142 = vadd.xlane.f32.xlu0 %v141
  %v143 = vpop.xlane.xlu0 %142
  %v144 = vadd.f32 %v62, %v63
  %145 = vadd.xlane.f32.xlu0 %v144
  %v146 = vpop.xlane.xlu0 %145
  %v147 = vadd.f32 %v64, %v65
  %148 = vadd.xlane.f32.xlu0 %v147
  %v149 = vpop.xlane.xlu0 %148
  %v150 = vadd.f32 %v66, %v67
  %151 = vadd.xlane.f32.xlu0 %v150
  %v152 = vpop.xlane.xlu0 %151
  %v153 = vadd.f32 %v68, %v69
  %154 = vadd.xlane.f32.xlu0 %v153
  %v155 = vpop.xlane.xlu0 %154
  %v156 = vadd.f32 %v70, %v71
  %157 = vadd.xlane.f32.xlu0 %v156
  %v158 = vpop.xlane.xlu0 %157
  %v159 = vadd.f32 %v72, %v73
  %160 = vadd.xlane.f32.xlu0 %v159
  %v161 = vpop.xlane.xlu0 %160
  %v162 = vadd.f32 %v74, %v75
  %163 = vadd.xlane.f32.xlu0 %v162
  %v164 = vpop.xlane.xlu0 %163
  %v165 = vadd.f32 %v76, %v77
  %166 = vadd.xlane.f32.xlu0 %v165
  %v167 = vpop.xlane.xlu0 %166
  %v168 = vadd.f32 %v78, %v79
  %169 = vadd.xlane.f32.xlu0 %v168
  %v170 = vpop.xlane.xlu0 %169
  %v171 = vadd.f32 %v80, %v81
  %172 = vadd.xlane.f32.xlu0 %v171
  %v173 = vpop.xlane.xlu0 %172
  %v174 = vadd.f32 %v82, %v83
  %175 = vadd.xlane.f32.xlu0 %v174
  %v176 = vpop.xlane.xlu0 %175
  %v177 = vadd.f32 %v84, %v85
  %178 = vadd.xlane.f32.xlu0 %v177
  %v179 = vpop.xlane.xlu0 %178
  %v180 = vadd.f32 %v86, %v87
  %181 = vadd.xlane.f32.xlu0 %v180
  %v182 = vpop.xlane.xlu0 %181
  %v183 = vadd.f32 %v88, %v89
  %184 = vadd.xlane.f32.xlu0 %v183
  %v185 = vpop.xlane.xlu0 %184
  %v186 = vld [vmem:[%s2] sm:$0xff]
  %v187 = vld [vmem:[%s2 + $0x8] sm:$0xff]
  %v188 = vld [vmem:[%s2 + $0x10] sm:$0xff]
  %v189 = vld [vmem:[%s2 + $0x18] sm:$0xff]
  %v190 = vld [vmem:[%s3] sm:$0xff]
  %v191 = vld [vmem:[%s3 + $0x8] sm:$0xff]
  %v192 = vld [vmem:[%s3 + $0x10] sm:$0xff]
  %v193 = vld [vmem:[%s3 + $0x18] sm:$0xff]
  %v210 = vlaneseq
  %v211 = vand.u32 %v210, 127
  %v212 = vlaneseq
  %v213 = vshrl.u32 %v212, 7
  %v214 = vsub.s32 %v211, %v213
  %v215 = vrot.slane %v140, %v214
  %v216 = vadd.s32 %v211, 4294967288
  %v217 = vlaneseq
  %v218 = vshrl.u32 %v217, 7
  %v219 = vsub.s32 %v216, %v218
  %v220 = vrot.slane %v143, %v219
  %vm221 = vcmask 130112
  %v222 = vsel %vm221, %v220, %v215
  %v223 = vadd.s32 %v211, 4294967280
  %v224 = vlaneseq
  %v225 = vshrl.u32 %v224, 7
  %v226 = vsub.s32 %v223, %v225
  %v227 = vrot.slane %v146, %v226
  %vm228 = vcmask 195712
  %v229 = vsel %vm228, %v227, %v222
  %v230 = vadd.s32 %v211, 4294967272
  %v231 = vlaneseq
  %v232 = vshrl.u32 %v231, 7
  %v233 = vsub.s32 %v230, %v232
  %v234 = vrot.slane %v149, %v233
  %vm235 = vcmask 261312
  %v236 = vsel %vm235, %v234, %v229
  %v237 = vlaneseq
  %v238 = vshrl.u32 %v237, 7
  %v239 = vsub.s32 %v211, %v238
  %v240 = vrot.slane %v152, %v239
  %v241 = vlaneseq
  %v242 = vshrl.u32 %v241, 7
  %v243 = vsub.s32 %v216, %v242
  %v244 = vrot.slane %v155, %v243
  %v245 = vsel %vm221, %v244, %v240
  %v246 = vlaneseq
  %v247 = vshrl.u32 %v246, 7
  %v248 = vsub.s32 %v223, %v247
  %v249 = vrot.slane %v158, %v248
  %v250 = vsel %vm228, %v249, %v245
  %v251 = vlaneseq
  %v252 = vshrl.u32 %v251, 7
  %v253 = vsub.s32 %v230, %v252
  %v254 = vrot.slane %v161, %v253
  %v255 = vsel %vm235, %v254, %v250
  %v256 = vlaneseq
  %v257 = vshrl.u32 %v256, 7
  %v258 = vsub.s32 %v211, %v257
  %v259 = vrot.slane %v164, %v258
  %v260 = vlaneseq
  %v261 = vshrl.u32 %v260, 7
  %v262 = vsub.s32 %v216, %v261
  %v263 = vrot.slane %v167, %v262
  %v264 = vsel %vm221, %v263, %v259
  %v265 = vlaneseq
  %v266 = vshrl.u32 %v265, 7
  %v267 = vsub.s32 %v223, %v266
  %v268 = vrot.slane %v170, %v267
  %v269 = vsel %vm228, %v268, %v264
  %v270 = vlaneseq
  %v271 = vshrl.u32 %v270, 7
  %v272 = vsub.s32 %v230, %v271
  %v273 = vrot.slane %v173, %v272
  %v274 = vsel %vm235, %v273, %v269
  %v275 = vlaneseq
  %v276 = vshrl.u32 %v275, 7
  %v277 = vsub.s32 %v211, %v276
  %v278 = vrot.slane %v176, %v277
  %v279 = vlaneseq
  %v280 = vshrl.u32 %v279, 7
  %v281 = vsub.s32 %v216, %v280
  %v282 = vrot.slane %v179, %v281
  %v283 = vsel %vm221, %v282, %v278
  %v284 = vlaneseq
  %v285 = vshrl.u32 %v284, 7
  %v286 = vsub.s32 %v223, %v285
  %v287 = vrot.slane %v182, %v286
  %v288 = vsel %vm228, %v287, %v283
  %v289 = vlaneseq
  %v290 = vshrl.u32 %v289, 7
  %v291 = vsub.s32 %v230, %v290
  %v292 = vrot.slane %v185, %v291
  %v293 = vsel %vm235, %v292, %v288
  %vm294 = vcmask 1041409
  %v295 = vsel %vm294, %v255, %v236
  %vm296 = vcmask 1042434
  %v297 = vsel %vm296, %v274, %v295
  %vm298 = vcmask 1043459
  %v299 = vsel %vm298, %v293, %v297
  %vm300 = vcmask 261120
  %v301 = vsel %vm300, %v299, 0
  %303 = vmatprep.subr.mxu0 0.0
  %304 = vmatpush1.msra.mxu0 0.0
  %305 = vmatprep.subr.mxu0 0.0
  %306 = vmatpush1.msra.mxu0 0.0
  %307 = vmatprep.subr.mxu0 0.0
  %308 = vmatpush1.msra.mxu0 0.0
  %309 = vmatprep.subr.mxu0 0.0
  %310 = vmatpush1.msra.mxu0 0.0
  %311 = vmatprep.subr.mxu0 0.0
  %312 = vmatpush1.msra.mxu0 0.0
  %313 = vmatprep.subr.mxu0 0.0
  %314 = vmatpush1.msra.mxu0 0.0
  %315 = vmatprep.subr.mxu0 0.0
  %316 = vmatpush1.msra.mxu0 0.0
  %317 = vmatprep.subr.mxu0 0.0
  %318 = vmatpush1.msra.mxu0 0.0
  %319 = vmatprep.subr.mxu0 0.0
  %320 = vmatpush1.msra.mxu0 0.0
  %321 = vmatprep.subr.mxu0 0.0
  %322 = vmatpush1.msra.mxu0 0.0
  %323 = vmatprep.subr.mxu0 0.0
  %324 = vmatpush1.msra.mxu0 0.0
  %325 = vmatprep.subr.mxu0 0.0
  %326 = vmatpush1.msra.mxu0 0.0
  %327 = vmatprep.subr.mxu0 0.0
  %328 = vmatpush1.msra.mxu0 %v193
  %329 = vmatprep.subr.mxu0 0.0
  %330 = vmatpush1.msra.mxu0 %v192
  %331 = vmatprep.subr.mxu0 0.0
  %332 = vmatpush1.msra.mxu0 %v191
  %333 = vmatprep.subr.mxu0 0.0
  %334 = vmatpush1.msra.mxu0 %v190
  %335 = vmatprep.subr.mxu0 0.0
  %336 = vmatpush2.msra.mxu0 0.0
  %337 = vmatprep.subr.mxu0 0.0
  %338 = vmatpush2.msra.mxu0 0.0
  %339 = vmatprep.subr.mxu0 0.0
  %340 = vmatpush2.msra.mxu0 0.0
  %341 = vmatprep.subr.mxu0 0.0
  %342 = vmatpush2.msra.mxu0 0.0
  %343 = vmatprep.subr.mxu0 0.0
  %344 = vmatpush2.msra.mxu0 0.0
  %345 = vmatprep.subr.mxu0 0.0
  %346 = vmatpush2.msra.mxu0 0.0
  %347 = vmatprep.subr.mxu0 0.0
  %348 = vmatpush2.msra.mxu0 0.0
  %349 = vmatprep.subr.mxu0 0.0
  %350 = vmatpush2.msra.mxu0 0.0
  %351 = vmatprep.subr.mxu0 0.0
  %352 = vmatpush2.msra.mxu0 0.0
  %353 = vmatprep.subr.mxu0 0.0
  %354 = vmatpush2.msra.mxu0 0.0
  %355 = vmatprep.subr.mxu0 0.0
  %356 = vmatpush2.msra.mxu0 0.0
  %357 = vmatprep.subr.mxu0 0.0
  %358 = vmatpush2.msra.mxu0 0.0
  %359 = vmatprep.subr.mxu0 0.0
  %360 = vmatpush2.msra.mxu0 0.0
  %361 = vmatprep.subr.mxu0 0.0
  %362 = vmatpush2.msra.mxu0 0.0
  %363 = vmatprep.subr.mxu0 0.0
  %364 = vmatpush2.msra.mxu0 0.0
  %365 = vmatprep.subr.mxu0 0.0
  %366 = vmatpush2.msra.mxu0 0.0
  %367 = vmatprep.mubr.f32.mxu0 0.0
  %368 = vmatmul.mubr.f32.gmra.mxu0 %v301
  %v369 = vpop.f32.mrf.mxu0
  %v370 = vadd.f32 0.0, %v369
  %v371 = vpop.f32.mrf.mxu0
  %372 = vdwg.mxu0
  %v389 = vlaneseq
  %v390 = vshrl.u32 %v389, 7
  %v391 = vsub.s32 %v211, %v390
  %v392 = vrot.slane %v92, %v391
  %v393 = vlaneseq
  %v394 = vshrl.u32 %v393, 7
  %v395 = vsub.s32 %v216, %v394
  %v396 = vrot.slane %v95, %v395
  %v397 = vsel %vm221, %v396, %v392
  %v398 = vlaneseq
  %v399 = vshrl.u32 %v398, 7
  %v400 = vsub.s32 %v223, %v399
  %v401 = vrot.slane %v98, %v400
  %v402 = vsel %vm228, %v401, %v397
  %v403 = vlaneseq
  %v404 = vshrl.u32 %v403, 7
  %v405 = vsub.s32 %v230, %v404
  %v406 = vrot.slane %v101, %v405
  %v407 = vsel %vm235, %v406, %v402
  %v408 = vlaneseq
  %v409 = vshrl.u32 %v408, 7
  %v410 = vsub.s32 %v211, %v409
  %v411 = vrot.slane %v104, %v410
  %v412 = vlaneseq
  %v413 = vshrl.u32 %v412, 7
  %v414 = vsub.s32 %v216, %v413
  %v415 = vrot.slane %v107, %v414
  %v416 = vsel %vm221, %v415, %v411
  %v417 = vlaneseq
  %v418 = vshrl.u32 %v417, 7
  %v419 = vsub.s32 %v223, %v418
  %v420 = vrot.slane %v110, %v419
  %v421 = vsel %vm228, %v420, %v416
  %v422 = vlaneseq
  %v423 = vshrl.u32 %v422, 7
  %v424 = vsub.s32 %v230, %v423
  %v425 = vrot.slane %v113, %v424
  %v426 = vsel %vm235, %v425, %v421
  %v427 = vlaneseq
  %v428 = vshrl.u32 %v427, 7
  %v429 = vsub.s32 %v211, %v428
  %v430 = vrot.slane %v116, %v429
  %v431 = vlaneseq
  %v432 = vshrl.u32 %v431, 7
  %v433 = vsub.s32 %v216, %v432
  %v434 = vrot.slane %v119, %v433
  %v435 = vsel %vm221, %v434, %v430
  %v436 = vlaneseq
  %v437 = vshrl.u32 %v436, 7
  %v438 = vsub.s32 %v223, %v437
  %v439 = vrot.slane %v122, %v438
  %v440 = vsel %vm228, %v439, %v435
  %v441 = vlaneseq
  %v442 = vshrl.u32 %v441, 7
  %v443 = vsub.s32 %v230, %v442
  %v444 = vrot.slane %v125, %v443
  %v445 = vsel %vm235, %v444, %v440
  %v446 = vlaneseq
  %v447 = vshrl.u32 %v446, 7
  %v448 = vsub.s32 %v211, %v447
  %v449 = vrot.slane %v128, %v448
  %v450 = vlaneseq
  %v451 = vshrl.u32 %v450, 7
  %v452 = vsub.s32 %v216, %v451
  %v453 = vrot.slane %v131, %v452
  %v454 = vsel %vm221, %v453, %v449
  %v455 = vlaneseq
  %v456 = vshrl.u32 %v455, 7
  %v457 = vsub.s32 %v223, %v456
  %v458 = vrot.slane %v134, %v457
  %v459 = vsel %vm228, %v458, %v454
  %v460 = vlaneseq
  %v461 = vshrl.u32 %v460, 7
  %v462 = vsub.s32 %v230, %v461
  %v463 = vrot.slane %v137, %v462
  %v464 = vsel %vm235, %v463, %v459
  %v465 = vsel %vm294, %v426, %v407
  %v466 = vsel %vm296, %v445, %v465
  %v467 = vsel %vm298, %v464, %v466
  %v468 = vsel %vm300, %v467, 0
  %470 = vmatprep.subr.mxu0 0.0
  %471 = vmatpush1.msra.mxu0 0.0
  %472 = vmatprep.subr.mxu0 0.0
  %473 = vmatpush1.msra.mxu0 0.0
  %474 = vmatprep.subr.mxu0 0.0
  %475 = vmatpush1.msra.mxu0 0.0
  %476 = vmatprep.subr.mxu0 0.0
  %477 = vmatpush1.msra.mxu0 0.0
  %478 = vmatprep.subr.mxu0 0.0
  %479 = vmatpush1.msra.mxu0 0.0
  %480 = vmatprep.subr.mxu0 0.0
  %481 = vmatpush1.msra.mxu0 0.0
  %482 = vmatprep.subr.mxu0 0.0
  %483 = vmatpush1.msra.mxu0 0.0
  %484 = vmatprep.subr.mxu0 0.0
  %485 = vmatpush1.msra.mxu0 0.0
  %486 = vmatprep.subr.mxu0 0.0
  %487 = vmatpush1.msra.mxu0 0.0
  %488 = vmatprep.subr.mxu0 0.0
  %489 = vmatpush1.msra.mxu0 0.0
  %490 = vmatprep.subr.mxu0 0.0
  %491 = vmatpush1.msra.mxu0 0.0
  %492 = vmatprep.subr.mxu0 0.0
  %493 = vmatpush1.msra.mxu0 0.0
  %494 = vmatprep.subr.mxu0 0.0
  %495 = vmatpush1.msra.mxu0 %v189
  %496 = vmatprep.subr.mxu0 0.0
  %497 = vmatpush1.msra.mxu0 %v188
  %498 = vmatprep.subr.mxu0 0.0
  %499 = vmatpush1.msra.mxu0 %v187
  %500 = vmatprep.subr.mxu0 0.0
  %501 = vmatpush1.msra.mxu0 %v186
  %502 = vmatprep.subr.mxu0 0.0
  %503 = vmatpush2.msra.mxu0 0.0
  %504 = vmatprep.subr.mxu0 0.0
  %505 = vmatpush2.msra.mxu0 0.0
  %506 = vmatprep.subr.mxu0 0.0
  %507 = vmatpush2.msra.mxu0 0.0
  %508 = vmatprep.subr.mxu0 0.0
  %509 = vmatpush2.msra.mxu0 0.0
  %510 = vmatprep.subr.mxu0 0.0
  %511 = vmatpush2.msra.mxu0 0.0
  %512 = vmatprep.subr.mxu0 0.0
  %513 = vmatpush2.msra.mxu0 0.0
  %514 = vmatprep.subr.mxu0 0.0
  %515 = vmatpush2.msra.mxu0 0.0
  %516 = vmatprep.subr.mxu0 0.0
  %517 = vmatpush2.msra.mxu0 0.0
  %518 = vmatprep.subr.mxu0 0.0
  %519 = vmatpush2.msra.mxu0 0.0
  %520 = vmatprep.subr.mxu0 0.0
  %521 = vmatpush2.msra.mxu0 0.0
  %522 = vmatprep.subr.mxu0 0.0
  %523 = vmatpush2.msra.mxu0 0.0
  %524 = vmatprep.subr.mxu0 0.0
  %525 = vmatpush2.msra.mxu0 0.0
  %526 = vmatprep.subr.mxu0 0.0
  %527 = vmatpush2.msra.mxu0 0.0
  %528 = vmatprep.subr.mxu0 0.0
  %529 = vmatpush2.msra.mxu0 0.0
  %530 = vmatprep.subr.mxu0 0.0
  %531 = vmatpush2.msra.mxu0 0.0
  %532 = vmatprep.subr.mxu0 0.0
  %533 = vmatpush2.msra.mxu0 0.0
  %534 = vmatprep.mubr.f32.mxu0 0.0
  %535 = vmatmul.mubr.f32.gmra.mxu0 %v468
  %v536 = vpop.f32.mrf.mxu0
  %v537 = vadd.f32 %v370, %v536
  %v538 = vpop.f32.mrf.mxu0
  %539 = vdwg.mxu0
  %v540 = vld [vmem:[%s4] sm:$0x1]
  %v542 = vlaneseq
  %v543 = vshrl.u32 %v542, 7
  %v544 = vsub.s32 0, %v543
  %v545 = vrot.slane %v540, %v544
  %v547 = vadd.f32 %v537, %v545
  %v548 = vmax.f32 %v547, 0.0
  %v549 = vld [vmem:[%s5] sm:$0x3]
  %v550 = vld [vmem:[%s6] sm:$0x1]
  %v552 = vlaneseq
  %v553 = vshrl.u32 %v552, 7
  %v554 = vsub.s32 0, %v553
  %v555 = vrot.slane %v550, %v554
  %vm557 = vcmask 15360
  %v559 = vsel %vm557, %v548, 0
  %vm561 = vcmask 1041408
  %v563 = vsel %vm561, %v549, 0
  %565 = vmatprep.subr.mxu0 0.0
  %566 = vmatpush1.msra.mxu0 0.0
  %567 = vmatprep.subr.mxu0 0.0
  %568 = vmatpush1.msra.mxu0 0.0
  %569 = vmatprep.subr.mxu0 0.0
  %570 = vmatpush1.msra.mxu0 0.0
  %571 = vmatprep.subr.mxu0 0.0
  %572 = vmatpush1.msra.mxu0 0.0
  %573 = vmatprep.subr.mxu0 0.0
  %574 = vmatpush1.msra.mxu0 0.0
  %575 = vmatprep.subr.mxu0 0.0
  %576 = vmatpush1.msra.mxu0 0.0
  %577 = vmatprep.subr.mxu0 0.0
  %578 = vmatpush1.msra.mxu0 0.0
  %579 = vmatprep.subr.mxu0 0.0
  %580 = vmatpush1.msra.mxu0 0.0
  %581 = vmatprep.subr.mxu0 0.0
  %582 = vmatpush1.msra.mxu0 0.0
  %583 = vmatprep.subr.mxu0 0.0
  %584 = vmatpush1.msra.mxu0 0.0
  %585 = vmatprep.subr.mxu0 0.0
  %586 = vmatpush1.msra.mxu0 0.0
  %587 = vmatprep.subr.mxu0 0.0
  %588 = vmatpush1.msra.mxu0 0.0
  %589 = vmatprep.subr.mxu0 0.0
  %590 = vmatpush1.msra.mxu0 0.0
  %591 = vmatprep.subr.mxu0 0.0
  %592 = vmatpush1.msra.mxu0 0.0
  %593 = vmatprep.subr.mxu0 0.0
  %594 = vmatpush1.msra.mxu0 0.0
  %595 = vmatprep.subr.mxu0 0.0
  %596 = vmatpush1.msra.mxu0 %v563
  %597 = vmatprep.subr.mxu0 0.0
  %598 = vmatpush2.msra.mxu0 0.0
  %599 = vmatprep.subr.mxu0 0.0
  %600 = vmatpush2.msra.mxu0 0.0
  %601 = vmatprep.subr.mxu0 0.0
  %602 = vmatpush2.msra.mxu0 0.0
  %603 = vmatprep.subr.mxu0 0.0
  %604 = vmatpush2.msra.mxu0 0.0
  %605 = vmatprep.subr.mxu0 0.0
  %606 = vmatpush2.msra.mxu0 0.0
  %607 = vmatprep.subr.mxu0 0.0
  %608 = vmatpush2.msra.mxu0 0.0
  %609 = vmatprep.subr.mxu0 0.0
  %610 = vmatpush2.msra.mxu0 0.0
  %611 = vmatprep.subr.mxu0 0.0
  %612 = vmatpush2.msra.mxu0 0.0
  %613 = vmatprep.subr.mxu0 0.0
  %614 = vmatpush2.msra.mxu0 0.0
  %615 = vmatprep.subr.mxu0 0.0
  %616 = vmatpush2.msra.mxu0 0.0
  %617 = vmatprep.subr.mxu0 0.0
  %618 = vmatpush2.msra.mxu0 0.0
  %619 = vmatprep.subr.mxu0 0.0
  %620 = vmatpush2.msra.mxu0 0.0
  %621 = vmatprep.subr.mxu0 0.0
  %622 = vmatpush2.msra.mxu0 0.0
  %623 = vmatprep.subr.mxu0 0.0
  %624 = vmatpush2.msra.mxu0 0.0
  %625 = vmatprep.subr.mxu0 0.0
  %626 = vmatpush2.msra.mxu0 0.0
  %627 = vmatprep.subr.mxu0 0.0
  %628 = vmatpush2.msra.mxu0 0.0
  %629 = vmatprep.mubr.f32.mxu0 0.0
  %630 = vmatmul.mubr.f32.gmra.mxu0 %v559
  %v631 = vpop.f32.mrf.mxu0
  %v632 = vadd.f32 %v555, %v631
  %v633 = vpop.f32.mrf.mxu0
  %634 = vdwg.mxu0
  %v635 = vxor.u32 %v632, 2147483648
  %v636 = vmul.f32 %v635, 1.442695
  %v637 = vpow.pop %v636
  %v638 = vadd.f32 %v637, 1.0
  %v639 = vrcp.pop %v638
  %v640 = vmul.f32 1.0, %v639
  %v641 = vlaneseq
  %v642 = vshrl.u32 %v641, 7
  %v643 = vsub.s32 0, %v642
  %v644 = vrot.slane %v640, %v643
  %646 = vbcast.lane.b32.xlu0 %v644, 256
  %v647 = vpop.permute.xlu0 %646
  %s649 = sor.u32 256, 8
  %650 = vbcast.lane.b32.xlu0 %v644, %s649
  %v651 = vpop.permute.xlu0 %650
  %s653 = sor.u32 256, 16
  %654 = vbcast.lane.b32.xlu0 %v644, %s653
  %v655 = vpop.permute.xlu0 %654
  %s657 = sor.u32 256, 24
  %658 = vbcast.lane.b32.xlu0 %v644, %s657
  %v659 = vpop.permute.xlu0 %658
  %v660 = vlaneseq
  %v661 = vshrl.u32 %v660, 7
  %v662 = vsub.s32 1, %v661
  %v663 = vrot.slane %v640, %v662
  %665 = vbcast.lane.b32.xlu0 %v663, 256
  %v666 = vpop.permute.xlu0 %665
  %s668 = sor.u32 256, 8
  %669 = vbcast.lane.b32.xlu0 %v663, %s668
  %v670 = vpop.permute.xlu0 %669
  %s672 = sor.u32 256, 16
  %673 = vbcast.lane.b32.xlu0 %v663, %s672
  %v674 = vpop.permute.xlu0 %673
  %s676 = sor.u32 256, 24
  %677 = vbcast.lane.b32.xlu0 %v663, %s676
  %v678 = vpop.permute.xlu0 %677
  %v679 = vlaneseq
  %v680 = vshrl.u32 %v679, 7
  %v681 = vsub.s32 2, %v680
  %v682 = vrot.slane %v640, %v681
  %684 = vbcast.lane.b32.xlu0 %v682, 256
  %v685 = vpop.permute.xlu0 %684
  %s687 = sor.u32 256, 8
  %688 = vbcast.lane.b32.xlu0 %v682, %s687
  %v689 = vpop.permute.xlu0 %688
  %s691 = sor.u32 256, 16
  %692 = vbcast.lane.b32.xlu0 %v682, %s691
  %v693 = vpop.permute.xlu0 %692
  %s695 = sor.u32 256, 24
  %696 = vbcast.lane.b32.xlu0 %v682, %s695
  %v697 = vpop.permute.xlu0 %696
  %v698 = vlaneseq
  %v699 = vshrl.u32 %v698, 7
  %v700 = vsub.s32 3, %v699
  %v701 = vrot.slane %v640, %v700
  %703 = vbcast.lane.b32.xlu0 %v701, 256
  %v704 = vpop.permute.xlu0 %703
  %s706 = sor.u32 256, 8
  %707 = vbcast.lane.b32.xlu0 %v701, %s706
  %v708 = vpop.permute.xlu0 %707
  %s710 = sor.u32 256, 16
  %711 = vbcast.lane.b32.xlu0 %v701, %s710
  %v712 = vpop.permute.xlu0 %711
  %s714 = sor.u32 256, 24
  %715 = vbcast.lane.b32.xlu0 %v701, %s714
  %v716 = vpop.permute.xlu0 %715
  %v717 = vmul.f32 %v647, %v26
  %v718 = vmul.f32 %v647, %v27
  %v719 = vmul.f32 %v651, %v28
  %v720 = vmul.f32 %v651, %v29
  %v721 = vmul.f32 %v655, %v30
  %v722 = vmul.f32 %v655, %v31
  %v723 = vmul.f32 %v659, %v32
  %v724 = vmul.f32 %v659, %v33
  %v725 = vmul.f32 %v666, %v34
  %v726 = vmul.f32 %v666, %v35
  %v727 = vmul.f32 %v670, %v36
  %v728 = vmul.f32 %v670, %v37
  %v729 = vmul.f32 %v674, %v38
  %v730 = vmul.f32 %v674, %v39
  %v731 = vmul.f32 %v678, %v40
  %v732 = vmul.f32 %v678, %v41
  %v733 = vmul.f32 %v685, %v42
  %v734 = vmul.f32 %v685, %v43
  %v735 = vmul.f32 %v689, %v44
  %v736 = vmul.f32 %v689, %v45
  %v737 = vmul.f32 %v693, %v46
  %v738 = vmul.f32 %v693, %v47
  %v739 = vmul.f32 %v697, %v48
  %v740 = vmul.f32 %v697, %v49
  %v741 = vmul.f32 %v704, %v50
  %v742 = vmul.f32 %v704, %v51
  %v743 = vmul.f32 %v708, %v52
  %v744 = vmul.f32 %v708, %v53
  %v745 = vmul.f32 %v712, %v54
  %v746 = vmul.f32 %v712, %v55
  %v747 = vmul.f32 %v716, %v56
  %v748 = vmul.f32 %v716, %v57
  %v749 = vadd.f32 %v58, %v717
  %v750 = vadd.f32 %v59, %v718
  %v751 = vadd.f32 %v60, %v719
  %v752 = vadd.f32 %v61, %v720
  %v753 = vadd.f32 %v62, %v721
  %v754 = vadd.f32 %v63, %v722
  %v755 = vadd.f32 %v64, %v723
  %v756 = vadd.f32 %v65, %v724
  %v757 = vadd.f32 %v66, %v725
  %v758 = vadd.f32 %v67, %v726
  %v759 = vadd.f32 %v68, %v727
  %v760 = vadd.f32 %v69, %v728
  %v761 = vadd.f32 %v70, %v729
  %v762 = vadd.f32 %v71, %v730
  %v763 = vadd.f32 %v72, %v731
  %v764 = vadd.f32 %v73, %v732
  %v765 = vadd.f32 %v74, %v733
  %v766 = vadd.f32 %v75, %v734
  %v767 = vadd.f32 %v76, %v735
  %v768 = vadd.f32 %v77, %v736
  %v769 = vadd.f32 %v78, %v737
  %v770 = vadd.f32 %v79, %v738
  %v771 = vadd.f32 %v80, %v739
  %v772 = vadd.f32 %v81, %v740
  %v773 = vadd.f32 %v82, %v741
  %v774 = vadd.f32 %v83, %v742
  %v775 = vadd.f32 %v84, %v743
  %v776 = vadd.f32 %v85, %v744
  %v777 = vadd.f32 %v86, %v745
  %v778 = vadd.f32 %v87, %v746
  %v779 = vadd.f32 %v88, %v747
  %v780 = vadd.f32 %v89, %v748
  %781 = vst [vmem:[%s7] sm:$0xff] %v749
  %782 = vst [vmem:[%s7 + $0x8] sm:$0xff] %v750
  %783 = vst [vmem:[%s7 + $0x10] sm:$0xff] %v751
  %784 = vst [vmem:[%s7 + $0x18] sm:$0xff] %v752
  %785 = vst [vmem:[%s7 + $0x20] sm:$0xff] %v753
  %786 = vst [vmem:[%s7 + $0x28] sm:$0xff] %v754
  %787 = vst [vmem:[%s7 + $0x30] sm:$0xff] %v755
  %788 = vst [vmem:[%s7 + $0x38] sm:$0xff] %v756
  %789 = vst [vmem:[%s7 + $0x40] sm:$0xff] %v757
  %790 = vst [vmem:[%s7 + $0x48] sm:$0xff] %v758
  %791 = vst [vmem:[%s7 + $0x50] sm:$0xff] %v759
  %792 = vst [vmem:[%s7 + $0x58] sm:$0xff] %v760
  %793 = vst [vmem:[%s7 + $0x60] sm:$0xff] %v761
  %794 = vst [vmem:[%s7 + $0x68] sm:$0xff] %v762
  %795 = vst [vmem:[%s7 + $0x70] sm:$0xff] %v763
  %796 = vst [vmem:[%s7 + $0x78] sm:$0xff] %v764
  %797 = vst [vmem:[%s7 + $0x80] sm:$0xff] %v765
  %798 = vst [vmem:[%s7 + $0x88] sm:$0xff] %v766
  %799 = vst [vmem:[%s7 + $0x90] sm:$0xff] %v767
  %800 = vst [vmem:[%s7 + $0x98] sm:$0xff] %v768
  %801 = vst [vmem:[%s7 + $0xa0] sm:$0xff] %v769
  %802 = vst [vmem:[%s7 + $0xa8] sm:$0xff] %v770
  %803 = vst [vmem:[%s7 + $0xb0] sm:$0xff] %v771
  %804 = vst [vmem:[%s7 + $0xb8] sm:$0xff] %v772
  %805 = vst [vmem:[%s7 + $0xc0] sm:$0xff] %v773
  %806 = vst [vmem:[%s7 + $0xc8] sm:$0xff] %v774
  %807 = vst [vmem:[%s7 + $0xd0] sm:$0xff] %v775
  %808 = vst [vmem:[%s7 + $0xd8] sm:$0xff] %v776
  %809 = vst [vmem:[%s7 + $0xe0] sm:$0xff] %v777
  %810 = vst [vmem:[%s7 + $0xe8] sm:$0xff] %v778
  %811 = vst [vmem:[%s7 + $0xf0] sm:$0xff] %v779
  %812 = vst [vmem:[%s7 + $0xf8] sm:$0xff] %v780
  // Predicated region
  $region30: #{fsp_forward.1} parent=0 // pred_check
    _
  $region31: #{fsp_forward.1} parent=0 // pred_check_branch
    %814 = sbr.rel (0) target = $region33
  $region32: #{fsp_forward.1} parent=0 // pred_region
    _
  $region33: #{fsp_forward.1} parent=0 // pred_fallthru
    _
  // Predicated region
  $region34: #{fsp_forward.1} parent=0 // pred_check
    _
  $region35: #{fsp_forward.1} parent=0 // pred_check_branch
    %816 = sbr.rel (0) target = $region37
  $region36: #{fsp_forward.1} parent=0 // pred_region
    _
  $region37: #{fsp_forward.1} parent=0 // pred_fallthru
    _

</llo_original>
